<compile_context>
chip_gen: v6e
topology: v6e:2x2x1
jax: 0.10.0
libtpu: 0.0.40
codegen_flags: <defaults>
</compile_context>

<pallas_src>
import functools

import jax
import jax.numpy as jnp
import numpy as np
from jax import lax
from jax.experimental import pallas as pl
from jax.experimental.pallas import tpu as pltpu


def _conv_bn_kernel(x_ref, w_ref, shift_ref, o_ref, xp_ref,
                    *, H, HO, KH, PAD, DIL):
    """One batch-tile of fused conv + BN.

    x_ref     : (NB, H, W*Cin)           input tile, compute_dtype (lane axis = W*Cin)
    w_ref     : (KH*W*Cin, WO*Cout)      block-Toeplitz weights, BN scale folded in
    shift_ref : (1, WO*Cout)             folded BN shift, tiled over WO (f32)
    o_ref     : (NB*HO, WO*Cout)         lane-dense output tile
    xp_ref    : (NB, H+2*PAD, W*Cin)     VMEM scratch (compute_dtype): H-padded input
    """
    NB, _, WCIN = x_ref.shape

    if PAD > 0:
        # Zero only the 2*PAD border rows; the interior is fully overwritten below.
        zrow = jnp.zeros((NB, PAD, WCIN), xp_ref.dtype)
        xp_ref[:, :PAD, :] = zrow
        xp_ref[:, PAD + H:, :] = zrow
        xp_ref[:, PAD:PAD + H, :] = x_ref[...]
        src = xp_ref
    else:
        src = x_ref

    # im2col over KH folded into the contraction: lane-concatenate the KH overlapping
    # H-slices (XLU work, otherwise idle here) -> one MXU pass with K = KH*W*Cin.
    taps = [
        src[:, kh * DIL:kh * DIL + HO, :].reshape(NB * HO, WCIN)
        for kh in range(KH)
    ]
    lhs = jnp.concatenate(taps, axis=-1) if KH > 1 else taps[0]
    acc = jnp.dot(lhs, w_ref[...], preferred_element_type=jnp.float32)

    # BN scale already folded into w_ref columns; epilogue = f32 shift only (no ReLU).
    o_ref[...] = (acc + shift_ref[...]).astype(o_ref.dtype)


def _toeplitz_weights(w_hwio, scale, W, WO, PAD, DIL, dtype):
    """(KH,KW,Cin,Cout) -> (KH*W*Cin, WO*Cout) block-Toeplitz weights, BN scale folded.

    w_toe[kh*W*Cin + wi*Cin + ci, wo*Cout + co] = w[kh, kw, ci, co] * scale[co]
      where wi = wo + kw*DIL - PAD; taps in the W zero-padding region are dropped.
    """
    KH, KW, CIN, COUT = w_hwio.shape
    wi = jnp.arange(W)
    wo = jnp.arange(WO)
    kw = jnp.arange(KW)
    tgt = wo[None, :, None] + kw[:, None, None] * DIL - PAD        # (KW, WO, 1)
    sel = (wi[None, None, :] == tgt).astype(jnp.float32)           # (KW, WO, W)
    w_toe = jnp.einsum('koi,hkcf->hicof',
                       sel, w_hwio.astype(jnp.float32))            # (KH, W, Cin, WO, Cout)
    w_toe = w_toe * scale[None, None, None, None, :]               # fold BN scale (f32)
    return w_toe.reshape(KH * W * CIN, WO * COUT).astype(dtype)


def basic_conv2d_nhwc(x_nhwc, w_hwio, gamma, beta, run_mean, run_var, *,
                      stride=1, padding=0, dilation=1, eps=1e-5,
                      compute_dtype=jnp.bfloat16, block_n=None):
    """x: (N,H,W,Cin), w: (KH,KW,Cin,Cout) -> (N,HO,WO,Cout). Conv(bias=False)+BN."""
    assert stride == 1, "kernel implemented for stride=1 (module default)"
    N, H, W, CIN = x_nhwc.shape
    KH, KW, _, COUT = w_hwio.shape
    HO = H + 2 * padding - dilation * (KH - 1)
    WO = W + 2 * padding - dilation * (KW - 1)
    assert HO > 0 and WO > 0

    if block_n is None:
        # grid >= 2 when possible: both v7x TensorCores + DMA/compute pipelining.
        NB = N // 2 if (N >= 2 and N % 2 == 0) else N
    else:
        NB = min(block_n, N)
    assert N % NB == 0
    # Keep the f32 accumulator vreg-resident (M rows <= ~256).
    assert NB * HO <= 256, "shrink block_n: accumulator would spill the vreg file"
    Hp = H + 2 * padding

    # Fold (W, Cin) onto the lane axis and cast once -> bf16 HBM->VMEM DMA.
    x2d = x_nhwc.reshape(N, H, W * CIN).astype(compute_dtype)

    # Fold BN running stats into per-channel scale/shift (f32); scale goes into the
    # Toeplitz weight columns, shift stays as a tiny lane-tiled epilogue input.
    scale = (gamma / jnp.sqrt(run_var + eps)).astype(jnp.float32)
    shift = (beta - run_mean * scale).astype(jnp.float32)
    w_toe = _toeplitz_weights(w_hwio, scale, W, WO, padding, dilation, compute_dtype)
    shift_t = jnp.tile(shift, WO).reshape(1, WO * COUT)            # lane = wo*Cout + co

    kernel = functools.partial(_conv_bn_kernel, H=H, HO=HO, KH=KH,
                               PAD=padding, DIL=dilation)

    # Explicit VMEM budget (double-buffered ins/outs + scratch) as a compiler hint.
    cbytes = jnp.dtype(compute_dtype).itemsize
    obytes = jnp.dtype(x_nhwc.dtype).itemsize
    est = (2 * NB * H * W * CIN * cbytes            # x tile, double-buffered
           + 2 * KH * W * CIN * WO * COUT * cbytes  # Toeplitz weight
           + 2 * WO * COUT * 4                      # shift
           + 2 * NB * HO * WO * COUT * obytes       # out tile
           + NB * Hp * W * CIN * cbytes)            # padded-input scratch
    vmem_limit = int(min(max(2 * est, 16 << 20), 64 << 20))

    out2d = pl.pallas_call(
        kernel,
        out_shape=jax.ShapeDtypeStruct((N * HO, WO * COUT), x_nhwc.dtype),
        grid_spec=pltpu.PrefetchScalarGridSpec(
            num_scalar_prefetch=0,
            grid=(N // NB,),
            in_specs=[
                pl.BlockSpec((NB, H, W * CIN), lambda b: (b, 0, 0)),
                pl.BlockSpec((KH * W * CIN, WO * COUT), lambda b: (0, 0)),
                pl.BlockSpec((1, WO * COUT), lambda b: (0, 0)),
            ],
            out_specs=pl.BlockSpec((NB * HO, WO * COUT), lambda b: (b, 0)),
            scratch_shapes=[pltpu.VMEM((NB, Hp, W * CIN), compute_dtype)],
        ),
        compiler_params=pltpu.CompilerParams(
            dimension_semantics=("parallel",),
            vmem_limit_bytes=vmem_limit),
    )(x2d, w_toe, shift_t)

    return out2d.reshape(N, HO, WO, COUT)


def basic_conv2d_nchw(x_nchw, w_oihw, gamma, beta, run_mean, run_var, *,
                      stride=1, padding=0, dilation=1, eps=1e-5,
                      compute_dtype=jnp.bfloat16):
    """PyTorch-convention entry: x (N,Cin,H,W), w (Cout,Cin,KH,KW) -> (N,Cout,Ho,Wo).

    The transposes here are module-boundary glue only; keep activations NHWC across
    layers (use basic_conv2d_nhwc) to avoid these per-layer HBM passes.
    """
    x_nhwc = jnp.transpose(x_nchw, (0, 2, 3, 1))
    w_hwio = jnp.transpose(w_oihw, (2, 3, 1, 0))
    y = basic_conv2d_nhwc(x_nhwc, w_hwio, gamma, beta, run_mean, run_var,
                          stride=stride, padding=padding, dilation=dilation,
                          eps=eps, compute_dtype=compute_dtype)
    return jnp.transpose(y, (0, 3, 1, 2))


def _reference_nchw(x, w, gamma, beta, run_mean, run_var, *, stride, padding,
                    dilation, eps):
    y = lax.conv_general_dilated(
        x, w, window_strides=(stride, stride),
        padding=((padding, padding), (padding, padding)),
        rhs_dilation=(dilation, dilation),
        dimension_numbers=("NCHW", "OIHW", "NCHW"),
        precision=lax.Precision.HIGHEST)
    s = (gamma / jnp.sqrt(run_var + eps)).reshape(1, -1, 1, 1)
    b = (beta - run_mean * gamma / jnp.sqrt(run_var + eps)).reshape(1, -1, 1, 1)
    return y * s + b


if __name__ == "__main__":
    # BasicConv2d(in_planes=4, out_planes=8, kernel_size=3, stride=1, padding=1)
    N, CIN, H, W = 2, 4, 16, 16
    COUT, K, STRIDE, PAD, DIL = 8, 3, 1, 1, 1
    EPS = 1e-5

    key = jax.random.PRNGKey(0)
    kx, kw, kg, kb, km, kv = jax.random.split(key, 6)
    x = jax.random.normal(kx, (N, CIN, H, W), jnp.float32)
    w = jax.random.normal(kw, (COUT, CIN, K, K), jnp.float32) * 0.1
    # synthetic (deterministic) BN parameters / running stats
    gamma = 1.0 + 0.1 * jax.random.normal(kg, (COUT,), jnp.float32)
    beta = 0.1 * jax.random.normal(kb, (COUT,), jnp.float32)
    run_mean = 0.05 * jax.random.normal(km, (COUT,), jnp.float32)
    run_var = 1.0 + 0.1 * jax.random.uniform(kv, (COUT,), jnp.float32)

    y = basic_conv2d_nchw(x, w, gamma, beta, run_mean, run_var,
                          stride=STRIDE, padding=PAD, dilation=DIL, eps=EPS)
    y = jax.block_until_ready(y)

    y_ref = _reference_nchw(x, w, gamma, beta, run_mean, run_var,
                            stride=STRIDE, padding=PAD, dilation=DIL, eps=EPS)
    # bf16 MXU operands with f32 accumulation -> tolerance relaxed accordingly.
    np.testing.assert_allclose(np.asarray(y), np.asarray(y_ref), rtol=2e-2, atol=2e-2)
    print("KERNEL_OK")
</pallas_src>

<mosaic_0001>
module attributes {stable_mosaic.version = 11 : i64} {
  func.func @_conv_bn_kernel(%arg0: i32, %arg1: memref<1x16x64xbf16, #tpu.memory_space<vmem>>, %arg2: memref<192x128xbf16, #tpu.memory_space<vmem>>, %arg3: memref<1x128xf32, #tpu.memory_space<vmem>>, %arg4: memref<16x128xf32, #tpu.memory_space<vmem>>, %arg5: memref<1x18x64xbf16, #tpu.memory_space<vmem>>) attributes {dimension_semantics = [#tpu.dimension_semantics<parallel>], iteration_bounds = array<i64: 2>, scalar_prefetch = 0 : i64, scratch_operands = 1 : i64, tpu.core_type = #tpu.core_type<tc>, window_params = [{transform_indices = @transform_0, window_bounds = array<i64: 1, 16, 64>}, {pipeline_mode = #tpu.pipeline_mode<synchronous>, transform_indices = @transform_1, window_bounds = array<i64: 192, 128>}, {pipeline_mode = #tpu.pipeline_mode<synchronous>, transform_indices = @transform_2, window_bounds = array<i64: 1, 128>}, {transform_indices = @transform_3, window_bounds = array<i64: 16, 128>}]} {
    %cst = arith.constant 0.000000e+00 : bf16
    %0 = vector.broadcast %cst : bf16 to vector<1x1x64xbf16>
    %c0 = arith.constant 0 : index
    %c0_0 = arith.constant 0 : index
    %c0_1 = arith.constant 0 : index
    %1 = vector.load %arg5[%c0, %c0_0, %c0_1] : memref<1x18x64xbf16, #tpu.memory_space<vmem>>, vector<1x1x64xbf16>
    tpu.vector_store %arg5[%c0, %c0_0, %c0_1], %0 {strides = array<i32>} : memref<1x18x64xbf16, #tpu.memory_space<vmem>>, vector<1x1x64xbf16>,
    %c0_2 = arith.constant 0 : index
    %c17 = arith.constant 17 : index
    %c0_3 = arith.constant 0 : index
    %2 = vector.load %arg5[%c0_2, %c17, %c0_3] : memref<1x18x64xbf16, #tpu.memory_space<vmem>>, vector<1x1x64xbf16>
    tpu.vector_store %arg5[%c0_2, %c17, %c0_3], %0 {strides = array<i32>} : memref<1x18x64xbf16, #tpu.memory_space<vmem>>, vector<1x1x64xbf16>,
    %c0_4 = arith.constant 0 : index
    %c0_5 = arith.constant 0 : index
    %c0_6 = arith.constant 0 : index
    %3 = vector.load %arg1[%c0_4, %c0_5, %c0_6] : memref<1x16x64xbf16, #tpu.memory_space<vmem>>, vector<1x16x64xbf16>
    %c0_7 = arith.constant 0 : index
    %c1 = arith.constant 1 : index
    %c0_8 = arith.constant 0 : index
    %4 = vector.load %arg5[%c0_7, %c1, %c0_8] : memref<1x18x64xbf16, #tpu.memory_space<vmem>>, vector<1x16x64xbf16>
    tpu.vector_store %arg5[%c0_7, %c1, %c0_8], %3 {strides = array<i32>} : memref<1x18x64xbf16, #tpu.memory_space<vmem>>, vector<1x16x64xbf16>,
    %c0_9 = arith.constant 0 : index
    %c0_10 = arith.constant 0 : index
    %c0_11 = arith.constant 0 : index
    %5 = vector.load %arg5[%c0_9, %c0_10, %c0_11] : memref<1x18x64xbf16, #tpu.memory_space<vmem>>, vector<1x16x64xbf16>
    %6 = vector.shape_cast %5 : vector<1x16x64xbf16> to vector<16x64xbf16>
    %c0_12 = arith.constant 0 : index
    %c1_13 = arith.constant 1 : index
    %c0_14 = arith.constant 0 : index
    %7 = vector.load %arg5[%c0_12, %c1_13, %c0_14] : memref<1x18x64xbf16, #tpu.memory_space<vmem>>, vector<1x16x64xbf16>
    %8 = vector.shape_cast %7 : vector<1x16x64xbf16> to vector<16x64xbf16>
    %c0_15 = arith.constant 0 : index
    %c2 = arith.constant 2 : index
    %c0_16 = arith.constant 0 : index
    %9 = vector.load %arg5[%c0_15, %c2, %c0_16] : memref<1x18x64xbf16, #tpu.memory_space<vmem>>, vector<1x16x64xbf16>
    %10 = vector.shape_cast %9 : vector<1x16x64xbf16> to vector<16x64xbf16>
    %11 = tpu.concatenate %6, %8, %10 in 1 : vector<16x64xbf16>, vector<16x64xbf16>, vector<16x64xbf16> -> vector<16x192xbf16>
    %c0_17 = arith.constant 0 : index
    %c0_18 = arith.constant 0 : index
    %12 = vector.load %arg2[%c0_17, %c0_18] : memref<192x128xbf16, #tpu.memory_space<vmem>>, vector<192x128xbf16>
    %cst_19 = arith.constant dense<0.000000e+00> : vector<16x128xf32>
    %13 = tpu.matmul %11, %12, %cst_19 {dimension_numbers = #tpu.dot_dimension_numbers<[1], [0], [0], [1], [0, 0, 1, 1], [], []>} : vector<16x192xbf16>, vector<192x128xbf16>, vector<16x128xf32> -> vector<16x128xf32>
    %c0_20 = arith.constant 0 : index
    %c0_21 = arith.constant 0 : index
    %14 = vector.load %arg3[%c0_20, %c0_21] : memref<1x128xf32, #tpu.memory_space<vmem>>, vector<1x128xf32>
    %15 = vector.broadcast %14 : vector<1x128xf32> to vector<16x128xf32>
    %16 = arith.addf %13, %15 : vector<16x128xf32>
    %c0_22 = arith.constant 0 : index
    %c0_23 = arith.constant 0 : index
    %17 = vector.load %arg4[%c0_22, %c0_23] : memref<16x128xf32, #tpu.memory_space<vmem>>, vector<16x128xf32>
    tpu.vector_store %arg4[%c0_22, %c0_23], %16 {strides = array<i32>} : memref<16x128xf32, #tpu.memory_space<vmem>>, vector<16x128xf32>,
    return
  }
  func.func @transform_0(%arg0: i32) -> (i32, i32, i32) {
    %c0_i32 = arith.constant 0 : i32
    %c0_i32_0 = arith.constant 0 : i32
    %c0_i32_1 = arith.constant 0 : i32
    return %arg0, %c0_i32, %c0_i32_0 : i32, i32, i32
  }
  func.func @transform_1(%arg0: i32) -> (i32, i32) {
    %c0_i32 = arith.constant 0 : i32
    %c0_i32_0 = arith.constant 0 : i32
    %c0_i32_1 = arith.constant 0 : i32
    return %c0_i32, %c0_i32_0 : i32, i32
  }
  func.func @transform_2(%arg0: i32) -> (i32, i32) {
    %c0_i32 = arith.constant 0 : i32
    %c0_i32_0 = arith.constant 0 : i32
    %c0_i32_1 = arith.constant 0 : i32
    return %c0_i32, %c0_i32_0 : i32, i32
  }
  func.func @transform_3(%arg0: i32) -> (i32, i32) {
    %c0_i32 = arith.constant 0 : i32
    %c0_i32_0 = arith.constant 0 : i32
    return %arg0, %c0_i32 : i32, i32
  }
}

</mosaic_0001>

<llo_original>
// kernel: tpu_custom_call.1
$region0: #{tpu_custom_call.1}
  #allocation0 [shape = 'u32[]', space=smem, size = 0x4, offset = 0x4, fixed_abs, tag = 'smem constant byte address 0x4 - core index']
  #allocation1 [shape = 'u32[144,128]{1,0:T(1,128)}', space=vmem, size = 0x12000, scoped, tag = 'internal scratch']
  #allocation2 [shape = 'bf16[1,18,64]{2,1,0:T(8,128)(2,1)}', space=vmem, size = 0x1800, scoped, tag = 'scratch operand']
  %s0 = inlined_call_operand.hbm [shape: bf16[2,16,64], index: 0, kind: input, shape index: {}]
  %s1 = inlined_call_operand.hbm [shape: bf16[192,128], index: 1, kind: input, shape index: {}]
  %s2 = inlined_call_operand.vmem [shape: f32[1,128], index: 2, kind: input, shape index: {}]
  %s3 = inlined_call_operand.hbm [shape: f32[32,128], index: 3, kind: output, shape index: {}]
  %s4 = sld [smem:[#allocation0]]
  $region53: #{tpu_custom_call.1} parent=0
    _
  %s6 = ssub.s32 1, %s4
  %s7 = scalar_select 0, %s6, %s4
  $region1: #{tpu_custom_call.1} parent=0
    #allocation3 [shape = 'u8[8192]{0}', space=vmem, size = 0x2000, scoped, tag = 'input window, operand 0']
    #allocation4 [shape = 's32[2]{0}', space=sflag, size = 0x8, scoped, tag = 'scoped memory for tpu_custom_call.1']
    #allocation5 [shape = 's32[2]{0}', space=sflag, size = 0x8, scoped, tag = 'scoped memory for tpu_custom_call.1']
    #allocation6 [shape = 'u8[49152]{0}', space=vmem, size = 0xc000, scoped, tag = 'input window, operand 1, single buffered']
    #allocation7 [shape = 's32[1]{0}', space=sflag, size = 0x4, scoped, tag = 'scoped memory for tpu_custom_call.1']
    #allocation8 [shape = 'u8[16384]{0}', space=vmem, size = 0x4000, scoped, tag = 'output window, operand 0']
    %8 = vsyncpa [#allocation4], 0
    %s9 = scalar_lea.sflag [#allocation4], 1
    %10 = vsyncpa %s9, 0
    %11 = vsyncpa [#allocation7], 0
    %12 = vsyncpa [#allocation5], 0
    %s13 = scalar_lea.sflag [#allocation5], 1
    %14 = vsyncpa %s13, 0
    loop: start=0, step=1, limit=4
    $region2: #{tpu_custom_call.1} parent=1 // loop_pre_header
      _
    $region3: #{tpu_custom_call.1} parent=1 // loop_header
      %s16 = sphi 0, %s20
      %p17 = scmp.ge.s32.totalorder %s16, 4
      %s26 = sphi 0, %s28
      %s29 = sphi 0, %s26
      %s30 = sphi 0, %s29
      %s46 = sphi 0, %s30
      %s50 = sphi 0, %s50
      %s52 = sphi 0, %s50
      %s53 = sphi 0, %s52
      %s67 = sphi 0, %s53
      %s71 = sphi 0, %s71
      %s73 = sphi 0, %s71
      %s74 = sphi 0, %s73
      %s88 = sphi 0, %s74
      %s94 = sphi 0, %s96
      %s97 = sphi 0, %s94
      %s98 = sphi 0, %s97
      %s114 = sphi 0, %s98
    $region4: #{tpu_custom_call.1} parent=1 // loop_header_branch
      %19 = sbr.rel (%p17) target = $region8
    $region5: #{tpu_custom_call.1} parent=1 // loop_body
      %s21 = ssub.s32 %s16, 1
      %s22 = ssub.s32 %s16, 2
      %s23 = sadd.s32 %s16, 1
      %s24 = ssub.s32 %s16, %s23
      %p25 = scmp.eq.s32.totalorder %s24, 0
      %s27 = sadd.s32 %s26, 1
      %s28 = scalar_select %p25, %s26, %s27
      %p31 = pneg %p25
      %p32 = scmp.eq.s32.totalorder %s16, 1
      %p33 = por %p31, %p32
      %p34 = scmp.ne.s32.totalorder %s26, %s29
      %p35 = scmp.eq.s32.totalorder %s16, 0
      %p36 = por %p34, %p35
      %p37 = scmp.ne.s32.totalorder %s26, %s29
      %p38 = scmp.eq.s32.totalorder %s21, 1
      %p39 = por %p37, %p38
      %p40 = scmp.ne.s32.totalorder %s29, %s30
      %p41 = scmp.eq.s32.totalorder %s21, 0
      %p42 = por %p40, %p41
      %p43 = scmp.ne.s32.totalorder %s29, %s30
      %p44 = scmp.eq.s32.totalorder %s22, 1
      %p45 = por %p43, %p44
      %p47 = scmp.ne.s32.totalorder %s30, %s46
      %p48 = scmp.eq.s32.totalorder %s22, 0
      %p49 = por %p47, %p48
      %s51 = sadd.s32 %s50, 1
      %p54 = scmp.eq.s32.totalorder %s16, 1
      %p55 = scmp.ne.s32.totalorder %s50, %s52
      %p56 = scmp.eq.s32.totalorder %s16, 0
      %p57 = por %p55, %p56
      %p58 = scmp.ne.s32.totalorder %s50, %s52
      %p59 = scmp.eq.s32.totalorder %s21, 1
      %p60 = por %p58, %p59
      %p61 = scmp.ne.s32.totalorder %s52, %s53
      %p62 = scmp.eq.s32.totalorder %s21, 0
      %p63 = por %p61, %p62
      %p64 = scmp.ne.s32.totalorder %s52, %s53
      %p65 = scmp.eq.s32.totalorder %s22, 1
      %p66 = por %p64, %p65
      %p68 = scmp.ne.s32.totalorder %s53, %s67
      %p69 = scmp.eq.s32.totalorder %s22, 0
      %p70 = por %p68, %p69
      %s72 = sadd.s32 %s71, 1
      %p75 = scmp.eq.s32.totalorder %s16, 1
      %p76 = scmp.ne.s32.totalorder %s71, %s73
      %p77 = scmp.eq.s32.totalorder %s16, 0
      %p78 = por %p76, %p77
      %p79 = scmp.ne.s32.totalorder %s71, %s73
      %p80 = scmp.eq.s32.totalorder %s21, 1
      %p81 = por %p79, %p80
      %p82 = scmp.ne.s32.totalorder %s73, %s74
      %p83 = scmp.eq.s32.totalorder %s21, 0
      %p84 = por %p82, %p83
      %p85 = scmp.ne.s32.totalorder %s73, %s74
      %p86 = scmp.eq.s32.totalorder %s22, 1
      %p87 = por %p85, %p86
      %p89 = scmp.ne.s32.totalorder %s74, %s88
      %p90 = scmp.eq.s32.totalorder %s22, 0
      %p91 = por %p89, %p90
      %s92 = ssub.s32 %s16, %s23
      %p93 = scmp.eq.s32.totalorder %s92, 0
      %s95 = sadd.s32 %s94, 1
      %s96 = scalar_select %p93, %s94, %s95
      %p99 = pneg %p93
      %p100 = scmp.eq.s32.totalorder %s16, 1
      %p101 = por %p99, %p100
      %p102 = scmp.ne.s32.totalorder %s94, %s97
      %p103 = scmp.eq.s32.totalorder %s16, 0
      %p104 = por %p102, %p103
      %p105 = scmp.ne.s32.totalorder %s94, %s97
      %p106 = scmp.eq.s32.totalorder %s21, 1
      %p107 = por %p105, %p106
      %p108 = scmp.ne.s32.totalorder %s97, %s98
      %p109 = scmp.eq.s32.totalorder %s21, 0
      %p110 = por %p108, %p109
      %p111 = scmp.ne.s32.totalorder %s97, %s98
      %p112 = scmp.eq.s32.totalorder %s22, 1
      %p113 = por %p111, %p112
      %p115 = scmp.ne.s32.totalorder %s98, %s114
      %p116 = scmp.eq.s32.totalorder %s22, 0
      %p117 = por %p115, %p116
      %p118 = scmp.le.s32.totalorder 1, %s16
      %p119 = scmp.lt.s32.totalorder %s16, 3
      %p120 = pnand %p118, %p119
      %p121 = pneg %p120
      // Predicated region
      $region9: #{tpu_custom_call.1} parent=5 // pred_check
        _
      $region10: #{tpu_custom_call.1} parent=5 // pred_check_branch
        %123 = sbr.rel (%p120) target = $region12
      $region11: #{tpu_custom_call.1} parent=5 // pred_region
        %s124 = ssub.s32 %s16, 1
        // Predicated region
        $region13: #{tpu_custom_call.1} parent=11 // pred_check
          %p125 = pneg %p63
        $region14: #{tpu_custom_call.1} parent=11 // pred_check_branch
          %127 = sbr.rel (%p125) target = $region16
        $region15: #{tpu_custom_call.1} parent=11 // pred_region
          %s129 = ssub.s32 1536, 1536
          %130 = vsyncadd [#allocation7], %s129
          %s131 = sshll.u32 [#allocation6], 4
          %s132 = int_to_ptr.vmem [resolvable:$true] %s131
          %137 = dma.hbm_to_vmem [thread:$0]  %s1, 1536, %s132, [#allocation7], 64, 64, 4
        $region16: #{tpu_custom_call.1} parent=11 // pred_fallthru
          _
        // Predicated region
        $region17: #{tpu_custom_call.1} parent=11 // pred_check
          %p138 = pneg %p84
        $region18: #{tpu_custom_call.1} parent=11 // pred_check_branch
          %140 = sbr.rel (%p138) target = $region20
        $region19: #{tpu_custom_call.1} parent=11 // pred_region
          _
        $region20: #{tpu_custom_call.1} parent=11 // pred_fallthru
          _
      $region12: #{tpu_custom_call.1} parent=5 // pred_fallthru
        _
      %p141 = scmp.lt.s32.totalorder %s16, 2
      // Predicated region
      $region21: #{tpu_custom_call.1} parent=5 // pred_check
        %p142 = pneg %p141
      $region22: #{tpu_custom_call.1} parent=5 // pred_check_branch
        %144 = sbr.rel (%p142) target = $region24
      $region23: #{tpu_custom_call.1} parent=5 // pred_region
        // Predicated region
        $region25: #{tpu_custom_call.1} parent=23 // pred_check
          %p145 = pneg %p36
        $region26: #{tpu_custom_call.1} parent=23 // pred_check_branch
          %147 = sbr.rel (%p145) target = $region28
        $region27: #{tpu_custom_call.1} parent=23 // pred_region
          %s148 = sand.u32 %s26, 1
          %s149 = scalar_lea.sflag [#allocation4], %s148
          %s150 = sand.u32 %s26, 1
          %s151 = smul.addr %s150, 8
          %s152 = scalar_lea.vmem [#allocation3], %s151
          %s154 = ssub.s32 128, 128
          %155 = vsyncadd %s149, %s154
          %s156 = smul.addr %s16, 2
          %s157 = smul.addr %s156, 64
          %s158 = scalar_lea.hbm %s0, %s157
          %s159 = sshll.u32 %s152, 4
          %s160 = int_to_ptr.vmem [resolvable:$true] %s159
          %165 = dma.hbm_to_vmem [thread:$0]  %s158, 128, %s160, %s149, 64, 64, 4
        $region28: #{tpu_custom_call.1} parent=23 // pred_fallthru
          _
      $region24: #{tpu_custom_call.1} parent=5 // pred_fallthru
        _
      %p166 = scmp.le.s32.totalorder 1, %s16
      %p167 = scmp.lt.s32.totalorder %s16, 3
      %p168 = pnand %p166, %p167
      %p169 = pneg %p168
      // Predicated region
      $region29: #{tpu_custom_call.1} parent=5 // pred_check
        _
      $region30: #{tpu_custom_call.1} parent=5 // pred_check_branch
        %171 = sbr.rel (%p168) target = $region32
      $region31: #{tpu_custom_call.1} parent=5 // pred_region
        %s172 = ssub.s32 %s16, 1
        %s173 = sand.u32 %s29, 1
        %s174 = scalar_lea.sflag [#allocation4], %s173
        %s175 = sand.u32 %s29, 1
        %s176 = smul.addr %s175, 8
        %s177 = scalar_lea.vmem [#allocation3], %s176
        // Predicated region
        $region33: #{tpu_custom_call.1} parent=31 // pred_check
          %p178 = pneg %p42
        $region34: #{tpu_custom_call.1} parent=31 // pred_check_branch
          %180 = sbr.rel (%p178) target = $region36
        $region35: #{tpu_custom_call.1} parent=31 // pred_region
          %181 = dma.done %s174, 128
        $region36: #{tpu_custom_call.1} parent=31 // pred_fallthru
          _
        // Predicated region
        $region37: #{tpu_custom_call.1} parent=31 // pred_check
          %p182 = pneg %p63
        $region38: #{tpu_custom_call.1} parent=31 // pred_check_branch
          %184 = sbr.rel (%p182) target = $region40
        $region39: #{tpu_custom_call.1} parent=31 // pred_region
          %185 = dma.done [#allocation7], 1536
        $region40: #{tpu_custom_call.1} parent=31 // pred_fallthru
          _
        %s186 = sand.u32 %s29, 1
        %s187 = scalar_lea.sflag [#allocation4], %s186
        %s188 = sand.u32 %s29, 1
        %s189 = smul.addr %s188, 8
        %s190 = scalar_lea.vmem [#allocation3], %s189
        %p191 = pneg %p42
        %p192 = pneg %p39
        %p193 = pneg %p63
        %p194 = pneg %p60
        %p195 = pneg %p84
        %p196 = pneg %p81
        %p197 = pneg %p110
        %p198 = pneg %p107
        %s199 = sand.u32 %s97, 1
        %s200 = scalar_lea.sflag [#allocation5], %s199
        %s201 = sand.u32 %s97, 1
        %s202 = smul.addr %s201, 16
        %s203 = scalar_lea.vmem [#allocation8], %s202
        %s204 = smul.u32 2, %s21
        %vm206 = vcmask 516096
        %vm207 = vsmask.f32 256
        %vm208 = vmand %vm206, %vm207
        %v209 = vld [vmem:[#allocation2] sm:$0x1]
        %v210 = vsel %vm208, 0, %v209
        %211 = vst [vmem:[#allocation2] sm:$0x1] %v210
        %vm212 = vsmask.f32 7938
        %vm213 = vmand %vm206, %vm212
        %v214 = vld [vmem:[#allocation2 + $0x8] sm:$0x1]
        %v215 = vsel %vm213, 0, %v214
        %216 = vst [vmem:[#allocation2 + $0x8] sm:$0x1] %v215
        %v217 = vld [vmem:[%s177] sm:$0xf]
        %v218 = vld [vmem:[%s177 + $0x4] sm:$0xf]
        %vm219 = vsmask.f32 4368
        %vm220 = vmor %vm207, %vm219
        %v222 = vshrl.u32 %v217, 16
        %v224 = vrot.slane %v222, 7
        %v225 = vshll.u32 %v217, 16
        %v227 = vor.u32 %v224, %v225
        %v228 = vrot.slane %v224, 4
        %v230 = vshrl.u32 %v218, 16
        %v232 = vrot.slane %v230, 7
        %v233 = vshll.u32 %v218, 16
        %v235 = vor.u32 %v232, %v233
        %v236 = vsel %vm220, %v228, %v235
        %v237 = vrot.slane %v232, 4
        %vm241 = vcmask 519168
        %vm242 = vmand %vm241, %vm212
        %v243 = vld [vmem:[#allocation2] sm:$0xf]
        %v244 = vsel %vm242, %v227, %v243
        %245 = vst [vmem:[#allocation2] sm:$0xf] %v244
        %vm246 = vcmask 519168
        %247 = vst.msk [vmem:[#allocation2 + $0x4] sm:$0xf] %vm246, %v236
        %v248 = vld [vmem:[#allocation2 + $0x8] sm:$0x1]
        %v249 = vsel %vm208, %v237, %v248
        %250 = vst [vmem:[#allocation2 + $0x8] sm:$0x1] %v249
        %v251 = vld [vmem:[#allocation2] sm:$0xf]
        %v252 = vld [vmem:[#allocation2 + $0x4] sm:$0xf]
        %v253 = vld [vmem:[#allocation2 + $0x8] sm:$0x1]
        %v254 = vld [vmem:[#allocation2] sm:$0xe]
        %v257 = vunpack.c.l.b16 %v251
        %v258 = vunpack.c.l.b16 %v252
        %v259 = vpack.c.b16 %v258, %v257
        %v261 = vunpack.c.l.b16 %v253
        %v262 = vpack.c.b16 %v261, %v261
        %vm263 = vsmask.f32 7424
        %v265 = vshrl.u32 %v259, 16
        %v267 = vshll.u32 %v259, 16
        %v269 = vrot.slane %v267, 1
        %v270 = vor.u32 %v265, %v269
        %v272 = vshll.u32 %v262, 16
        %v274 = vrot.slane %v272, 1
        %v275 = vsel %vm263, %v270, %v274
        %276 = vrot.lane.b32.xlu0 %v275, 64
        %v277 = vpop.permute.xlu0 %276
        %v279 = vunpack.c.l.b16 %v254
        %v280 = vpack.c.b16 %v258, %v279
        %vm281 = vcmask 1046528
        %v282 = vrot.slane %v280, 1
        %v283 = vrot.slane %v262, 1
        %v284 = vsel %vm281, %v282, %v283
        %vm285 = vcmask 523264
        %v287 = vsel %vm285, %v259, %v277
        %v289 = vld [vmem:[#allocation6] sm:$0xf]
        %v290 = vld [vmem:[#allocation6 + $0x4] sm:$0xf]
        %v291 = vld [vmem:[#allocation6 + $0x8] sm:$0xf]
        %v292 = vld [vmem:[#allocation6 + $0xc] sm:$0xf]
        %v293 = vld [vmem:[#allocation6 + $0x10] sm:$0xf]
        %v294 = vld [vmem:[#allocation6 + $0x14] sm:$0xf]
        %v295 = vld [vmem:[#allocation6 + $0x18] sm:$0xf]
        %v296 = vld [vmem:[#allocation6 + $0x1c] sm:$0xf]
        %v297 = vld [vmem:[#allocation6 + $0x20] sm:$0xf]
        %v298 = vld [vmem:[#allocation6 + $0x24] sm:$0xf]
        %v299 = vld [vmem:[#allocation6 + $0x28] sm:$0xf]
        %v300 = vld [vmem:[#allocation6 + $0x2c] sm:$0xf]
        %v301 = vld [vmem:[#allocation6 + $0x30] sm:$0xf]
        %v302 = vld [vmem:[#allocation6 + $0x34] sm:$0xf]
        %v303 = vld [vmem:[#allocation6 + $0x38] sm:$0xf]
        %v304 = vld [vmem:[#allocation6 + $0x3c] sm:$0xf]
        %v305 = vld [vmem:[#allocation6 + $0x40] sm:$0xf]
        %v306 = vld [vmem:[#allocation6 + $0x44] sm:$0xf]
        %v307 = vld [vmem:[#allocation6 + $0x48] sm:$0xf]
        %v308 = vld [vmem:[#allocation6 + $0x4c] sm:$0xf]
        %v309 = vld [vmem:[#allocation6 + $0x50] sm:$0xf]
        %v310 = vld [vmem:[#allocation6 + $0x54] sm:$0xf]
        %v311 = vld [vmem:[#allocation6 + $0x58] sm:$0xf]
        %v312 = vld [vmem:[#allocation6 + $0x5c] sm:$0xf]
        %v313 = vld [vmem:[%s2] sm:$0x1]
        %v315 = vlaneseq
        %v316 = vshrl.u32 %v315, 7
        %v317 = vsub.s32 0, %v316
        %v318 = vrot.slane %v313, %v317
        %v344 = vunpack.c.l.b16 %v289
        %v345 = vunpack.c.l.b16 %v290
        %v346 = vunpack.c.l.b16 %v291
        %v347 = vunpack.c.l.b16 %v292
        %v348 = vunpack.c.l.b16 %v293
        %v349 = vunpack.c.l.b16 %v294
        %v350 = vunpack.c.l.b16 %v295
        %v351 = vunpack.c.l.b16 %v296
        %v352 = vunpack.c.l.b16 %v297
        %v353 = vunpack.c.l.b16 %v298
        %v354 = vunpack.c.l.b16 %v299
        %v355 = vunpack.c.l.b16 %v300
        %v356 = vunpack.c.l.b16 %v301
        %v357 = vunpack.c.l.b16 %v302
        %v358 = vunpack.c.l.b16 %v303
        %v359 = vunpack.c.l.b16 %v304
        %v360 = vunpack.c.l.b16 %v305
        %v361 = vunpack.c.l.b16 %v306
        %v362 = vunpack.c.l.b16 %v307
        %v363 = vunpack.c.l.b16 %v308
        %v364 = vunpack.c.l.b16 %v309
        %v365 = vunpack.c.l.b16 %v310
        %v366 = vunpack.c.l.b16 %v311
        %v367 = vunpack.c.l.b16 %v312
        %v368 = vpack.c.b16 %v345, %v344
        %v369 = vpack.c.b16 %v347, %v346
        %v370 = vpack.c.b16 %v349, %v348
        %v371 = vpack.c.b16 %v351, %v350
        %v372 = vpack.c.b16 %v353, %v352
        %v373 = vpack.c.b16 %v355, %v354
        %v374 = vpack.c.b16 %v357, %v356
        %v375 = vpack.c.b16 %v359, %v358
        %v376 = vpack.c.b16 %v361, %v360
        %v377 = vpack.c.b16 %v363, %v362
        %v378 = vpack.c.b16 %v365, %v364
        %v379 = vpack.c.b16 %v367, %v366
        %v393 = vsel %vm285, %v284, 0
        %395 = vmatprep.subr.bf16.mxu0 0
        %396 = vmatpush1.bf16.msra.mxu0 %v375
        %397 = vmatprep.subr.bf16.mxu0 0
        %398 = vmatpush1.bf16.msra.mxu0 %v374
        %399 = vmatprep.subr.bf16.mxu0 0
        %400 = vmatpush1.bf16.msra.mxu0 %v373
        %401 = vmatprep.subr.bf16.mxu0 0
        %402 = vmatpush1.bf16.msra.mxu0 %v372
        %403 = vmatprep.subr.bf16.mxu0 0
        %404 = vmatpush1.bf16.msra.mxu0 %v371
        %405 = vmatprep.subr.bf16.mxu0 0
        %406 = vmatpush1.bf16.msra.mxu0 %v370
        %407 = vmatprep.subr.bf16.mxu0 0
        %408 = vmatpush1.bf16.msra.mxu0 %v369
        %409 = vmatprep.subr.bf16.mxu0 0
        %410 = vmatpush1.bf16.msra.mxu0 %v368
        %411 = vmatprep.subr.bf16.mxu0 0
        %412 = vmatpush2.bf16.msra.mxu0 0
        %413 = vmatprep.subr.bf16.mxu0 0
        %414 = vmatpush2.bf16.msra.mxu0 0
        %415 = vmatprep.subr.bf16.mxu0 0
        %416 = vmatpush2.bf16.msra.mxu0 0
        %417 = vmatprep.subr.bf16.mxu0 0
        %418 = vmatpush2.bf16.msra.mxu0 0
        %419 = vmatprep.subr.bf16.mxu0 0
        %420 = vmatpush2.bf16.msra.mxu0 %v379
        %421 = vmatprep.subr.bf16.mxu0 0
        %422 = vmatpush2.bf16.msra.mxu0 %v378
        %423 = vmatprep.subr.bf16.mxu0 0
        %424 = vmatpush2.bf16.msra.mxu0 %v377
        %425 = vmatprep.subr.bf16.mxu0 0
        %426 = vmatpush2.bf16.msra.mxu0 %v376
        %427 = vmatprep.mubr.bf16.mxu0 %v393
        %428 = vmatmul.mubr.bf16.gmra.mxu0 %v287
        %v429 = vpop.f32.mrf.mxu0
        %v430 = vadd.f32 %v318, %v429
        %v431 = vpop.f32.mrf.mxu0
        %v432 = vpop.f32.mrf.mxu0
        %v433 = vadd.f32 %v318, %v432
        %v434 = vpop.f32.mrf.mxu0
        %435 = vdwg.mxu0
        %436 = vst [vmem:[%s203] sm:$0xff] %v430
        %437 = vst [vmem:[%s203 + $0x8] sm:$0xff] %v433
        %s438 = sand.u32 %s97, 1
        %s439 = scalar_lea.sflag [#allocation5], %s438
        %s440 = sand.u32 %s97, 1
        %s441 = smul.addr %s440, 16
        %s442 = scalar_lea.vmem [#allocation8], %s441
        // Predicated region
        $region41: #{tpu_custom_call.1} parent=31 // pred_check
          %p443 = pneg %p107
        $region42: #{tpu_custom_call.1} parent=31 // pred_check_branch
          %445 = sbr.rel (%p443) target = $region44
        $region43: #{tpu_custom_call.1} parent=31 // pred_region
          %s446 = smul.u32 2, %s21
          %s448 = ssub.s32 256, 256
          %449 = vsyncadd %s439, %s448
          %s450 = smul.addr %s446, 128
          %s451 = scalar_lea.hbm %s3, %s450
          %s452 = sshll.u32 %s442, 4
          %s453 = int_to_ptr.vmem [resolvable:$true] %s452
          %458 = dma.vmem_to_hbm [thread:$0]  %s453, 256, %s451, %s439, 128, 128, 8
        $region44: #{tpu_custom_call.1} parent=31 // pred_fallthru
          _
      $region32: #{tpu_custom_call.1} parent=5 // pred_fallthru
        _
      %p459 = scmp.le.s32.totalorder 2, %s16
      // Predicated region
      $region45: #{tpu_custom_call.1} parent=5 // pred_check
        %p460 = pneg %p459
      $region46: #{tpu_custom_call.1} parent=5 // pred_check_branch
        %462 = sbr.rel (%p460) target = $region48
      $region47: #{tpu_custom_call.1} parent=5 // pred_region
        %s463 = ssub.s32 %s16, 2
        // Predicated region
        $region49: #{tpu_custom_call.1} parent=47 // pred_check
          %p464 = pneg %p113
        $region50: #{tpu_custom_call.1} parent=47 // pred_check_branch
          %466 = sbr.rel (%p464) target = $region52
        $region51: #{tpu_custom_call.1} parent=47 // pred_region
          %s467 = sand.u32 %s98, 1
          %s468 = scalar_lea.sflag [#allocation5], %s467
          %s469 = sand.u32 %s98, 1
          %s470 = smul.addr %s469, 16
          %s471 = scalar_lea.vmem [#allocation8], %s470
          %472 = dma.done %s468, 256
        $region52: #{tpu_custom_call.1} parent=47 // pred_fallthru
          _
      $region48: #{tpu_custom_call.1} parent=5 // pred_fallthru
        _
    $region6: #{tpu_custom_call.1} parent=1 // loop_footer
      %s20 = sadd.s32 1, %s16
    $region7: #{tpu_custom_call.1} parent=1 // loop_footer_branch
      %15 = sbr.rel target = $region3
    $region8: #{tpu_custom_call.1} parent=1 // loop_exit
      _
    %473 = vsyncpa [#allocation4], 1
    %s474 = scalar_lea.sflag [#allocation4], 1
    %475 = vsyncpa %s474, 1
    %476 = vsyncpa [#allocation7], 1
    %477 = vsyncpa [#allocation5], 1
    %s478 = scalar_lea.sflag [#allocation5], 1
    %479 = vsyncpa %s478, 1

</llo_original>
